<compile_context>
chip_gen: v7x
topology: tpu7x:2x2x1
jax: 0.10.0
libtpu: 0.0.40
codegen_flags: <defaults>
</compile_context>

<pallas_src>
import jax
import jax.numpy as jnp
from jax.experimental import pallas as pl
from jax.experimental.pallas import tpu as pltpu


def _identity_lift_kernel(x_ref, o_ref):
    # Identity observable: f(X) = X.  Whole-tile pass-through (no in-kernel
    # slicing/reshaping, so stores stay unmasked full-width vst).
    o_ref[...] = x_ref[...]


def _validate(x):
    """Mirror of kausal's validate(X): basic structural checks."""
    x = jnp.asarray(x)
    if x.ndim < 2:
        raise ValueError("X must have at least 2 dimensions (batch, ...)")
    if not jnp.issubdtype(x.dtype, jnp.floating):
        raise TypeError("X must be a floating-point array")
    return x


def _vmem_limit_bytes():
    """~80% of physical VMEM: generation-aware headroom for Mosaic scratch."""
    cap = None
    try:
        cap = int(getattr(pltpu.get_tpu_info(), "vmem_capacity_bytes", 0)) or None
    except Exception:
        cap = None
    if cap is None:
        cap = 64 << 20  # conservative fallback: v7x per-TensorCore VMEM
    return (cap * 4) // 5


def _pick_width(total, max_lane_width):
    """Largest multiple of 128 <= max_lane_width that exactly divides `total`,
    preferring widths that leave >= 8 rows (better sublane utilization).
    Returns None when `total` is not a multiple of 128."""
    if total % 128 != 0:
        return None
    q = total // 128
    kmax = max(1, max_lane_width // 128)
    best_any, best_tall = 1, None
    for k in range(1, kmax + 1):
        if q % k == 0:
            best_any = k
            if q // k >= 8:
                best_tall = k
    return 128 * (best_tall if best_tall is not None else best_any)


def _copy_aligned_2d(x2d, *, vmem_limit, block_bytes):
    """Identity copy of a (rows, width) slab, width a multiple of 128."""
    rows, width = x2d.shape
    dtype = x2d.dtype
    itemsize = jnp.dtype(dtype).itemsize
    sublane_min = max(8, 32 // itemsize)  # f32: 8, bf16: 16, fp8/int8: 32
    row_bytes = width * itemsize

    if rows <= sublane_min:
        # Single full-extent block (legal: block dims equal array dims).
        block_rows = rows
    else:
        by_bytes = max(sublane_min,
                       (block_bytes // row_bytes) // sublane_min * sublane_min)
        # Keep at least 2 grid steps so ("parallel",) shards over v7x's 2 TCs.
        half = max(sublane_min, (rows // 2) // sublane_min * sublane_min)
        block_rows = min(by_bytes, half)

    grid = pl.cdiv(rows, block_rows)

    return pl.pallas_call(
        _identity_lift_kernel,
        out_shape=jax.ShapeDtypeStruct((rows, width), dtype),
        grid=(grid,),
        in_specs=[pl.BlockSpec((block_rows, width), lambda i: (i, 0))],
        out_specs=pl.BlockSpec((block_rows, width), lambda i: (i, 0)),
        compiler_params=pltpu.CompilerParams(
            dimension_semantics=("parallel",),
            vmem_limit_bytes=vmem_limit,
        ),
        cost_estimate=pl.CostEstimate(
            flops=0, transcendentals=0,
            bytes_accessed=2 * rows * width * itemsize),
    )(x2d)


def _copy_whole_block(flat):
    """Small non-128-divisible arrays: one full-extent block, no padding."""
    total = flat.shape[0]
    dtype = flat.dtype
    itemsize = jnp.dtype(dtype).itemsize
    out = pl.pallas_call(
        _identity_lift_kernel,
        out_shape=jax.ShapeDtypeStruct((1, total), dtype),
        cost_estimate=pl.CostEstimate(
            flops=0, transcendentals=0, bytes_accessed=2 * total * itemsize),
    )(flat.reshape(1, total))
    return out.reshape(total)


def base_observables_forward(x, *, max_lane_width=4096):
    """Identity lift of state X to observables f(X) via a Pallas copy kernel.

    Works for any float array; never pads the whole array.  Returns an array
    with the same shape and dtype as x.
    """
    x = _validate(x)
    orig_shape = x.shape
    total = x.size
    itemsize = jnp.dtype(x.dtype).itemsize

    vmem_limit = _vmem_limit_bytes()
    block_bytes = vmem_limit // 6  # in+out double-buffered (4x block) fits

    flat = x.reshape(-1)
    width = _pick_width(total, max_lane_width)

    if width is not None:
        # Exact (rows, width) factorization: zero padding, zero extra XLA ops.
        out = _copy_aligned_2d(flat.reshape(total // width, width),
                               vmem_limit=vmem_limit, block_bytes=block_bytes)
        return out.reshape(orig_shape)

    if total * itemsize <= (256 << 10):
        # Small unaligned: single full-extent block (partial lane writes are
        # masked, but the array is tiny).  One HBM round trip, no pad/slice.
        return _copy_whole_block(flat).reshape(orig_shape)

    # Large unaligned: fast kernel on the 128-aligned bulk, tiny XLA copy of
    # the (<128-element) tail.  The concat adds one HBM round trip (2 total),
    # still cheaper than the old pad + kernel + slice (3 round trips).
    # TODO(synk): a chunked HBM->HBM DMA kernel (memory_space=pl.ANY +
    # pltpu.make_async_copy) would remove this extra round trip entirely.
    bulk = (total // 128) * 128
    bulk_width = _pick_width(bulk, max_lane_width)
    bulk_out = _copy_aligned_2d(
        flat[:bulk].reshape(bulk // bulk_width, bulk_width),
        vmem_limit=vmem_limit, block_bytes=block_bytes)
    out = jnp.concatenate([bulk_out.reshape(bulk), flat[bulk:]])
    return out.reshape(orig_shape)


if __name__ == "__main__":
    key = jax.random.PRNGKey(0)

    # NCHW state tensor, small shapes: batch=2, channels=4, spatial=16x16.
    x = jax.random.normal(key, (2, 4, 16, 16), dtype=jnp.float32)
    fx = base_observables_forward(x)
    jax.block_until_ready(fx)
    assert fx.shape == x.shape and fx.dtype == x.dtype
    assert bool(jnp.all(fx == x))

    # Non-128-divisible size exercises the no-pad single-block path.
    y = jax.random.normal(key, (2, 3, 5, 7), dtype=jnp.float32)
    fy = base_observables_forward(y)
    jax.block_until_ready(fy)
    assert fy.shape == y.shape and bool(jnp.all(fy == y))

    print("KERNEL_OK")
</pallas_src>

<mosaic_0001>
module attributes {stable_mosaic.version = 11 : i64} {
  func.func @_identity_lift_kernel(%arg0: i32, %arg1: memref<8x256xf32, #tpu.memory_space<vmem>>, %arg2: memref<8x256xf32, #tpu.memory_space<vmem>>) attributes {dimension_semantics = [#tpu.dimension_semantics<parallel>], iteration_bounds = array<i64: 1>, scalar_prefetch = 0 : i64, scratch_operands = 0 : i64, tpu.core_type = #tpu.core_type<tc>, window_params = [{transform_indices = @transform_0, window_bounds = array<i64: 8, 256>}, {transform_indices = @transform_1, window_bounds = array<i64: 8, 256>}]} {
    %c0 = arith.constant 0 : index
    %c0_0 = arith.constant 0 : index
    %0 = vector.load %arg1[%c0, %c0_0] : memref<8x256xf32, #tpu.memory_space<vmem>>, vector<8x256xf32>
    %c0_1 = arith.constant 0 : index
    %c0_2 = arith.constant 0 : index
    %1 = vector.load %arg2[%c0_1, %c0_2] : memref<8x256xf32, #tpu.memory_space<vmem>>, vector<8x256xf32>
    tpu.vector_store %arg2[%c0_1, %c0_2], %0 {strides = array<i32>} : memref<8x256xf32, #tpu.memory_space<vmem>>, vector<8x256xf32>,
    return
  }
  func.func @transform_0(%arg0: i32) -> (i32, i32) {
    %c0_i32 = arith.constant 0 : i32
    %c0_i32_0 = arith.constant 0 : i32
    return %arg0, %c0_i32 : i32, i32
  }
  func.func @transform_1(%arg0: i32) -> (i32, i32) {
    %c0_i32 = arith.constant 0 : i32
    %c0_i32_0 = arith.constant 0 : i32
    return %arg0, %c0_i32 : i32, i32
  }
}

</mosaic_0001>

<llo_original>
// kernel: tpu_custom_call.1
$region0: #{tpu_custom_call.1}
  #allocation0 [shape = 'u32[]', space=smem, size = 0x4, offset = 0x4, fixed_abs, tag = 'smem constant byte address 0x4 - core index']
  #allocation1 [shape = 'u32[144,128]{1,0:T(1,128)}', space=vmem, size = 0x12000, scoped, tag = 'internal scratch']
  %s0 = inlined_call_operand.hbm [shape: f32[8,256], index: 0, kind: input, shape index: {}]
  %s1 = inlined_call_operand.hbm [shape: f32[8,256], index: 1, kind: output, shape index: {}]
  %s2 = sld [smem:[#allocation0]]
  $region18: #{tpu_custom_call.1} parent=0
    _
  %s4 = ssub.s32 1, %s2
  %s5 = scalar_select 0, %s4, %s2
  $region1: #{tpu_custom_call.1} parent=0
    #allocation2 [shape = 'u8[8192]{0}', space=vmem, size = 0x2000, scoped, tag = 'input window, operand 0, single buffered']
    #allocation3 [shape = 's32[1]{0}', space=sflag, size = 0x4, scoped, tag = 'scoped memory for tpu_custom_call.1']
    #allocation4 [shape = 's32[1]{0}', space=sflag, size = 0x4, scoped, tag = 'scoped memory for tpu_custom_call.1']
    #allocation5 [shape = 'u8[8192]{0}', space=vmem, size = 0x2000, scoped, tag = 'output window, operand 0, single buffered']
    %6 = vsyncpa [#allocation3], 0
    %7 = vsyncpa [#allocation4], 0
    // Predicated region
    $region2: #{tpu_custom_call.1} parent=1 // pred_check
      _
    $region3: #{tpu_custom_call.1} parent=1 // pred_check_branch
      %9 = sbr.rel (0) target = $region5
    $region4: #{tpu_custom_call.1} parent=1 // pred_region
      %s11 = ssub.s32 256, 256
      %12 = vsyncadd [#allocation3], %s11
      %s14 = sshll.u32 [#allocation2], 4
      %s15 = int_to_ptr.vmem [resolvable:$true] %s14
      %17 = dma.hbm_to_vmem [thread:$0]  %s0, 256, %s15, [#allocation3]
    $region5: #{tpu_custom_call.1} parent=1 // pred_fallthru
      _
    // Predicated region
    $region6: #{tpu_custom_call.1} parent=1 // pred_check
      _
    $region7: #{tpu_custom_call.1} parent=1 // pred_check_branch
      %19 = sbr.rel (0) target = $region9
    $region8: #{tpu_custom_call.1} parent=1 // pred_region
      %20 = dma.done [#allocation3], 256
    $region9: #{tpu_custom_call.1} parent=1 // pred_fallthru
      _
    %v21 = vld [vmem:[#allocation2] sm:$0xff]
    %v22 = vld [vmem:[#allocation2 + $0x8] sm:$0xff]
    %23 = vst [vmem:[#allocation5] sm:$0xff] %v21
    %24 = vst [vmem:[#allocation5 + $0x8] sm:$0xff] %v22
    // Predicated region
    $region10: #{tpu_custom_call.1} parent=1 // pred_check
      _
    $region11: #{tpu_custom_call.1} parent=1 // pred_check_branch
      %26 = sbr.rel (0) target = $region13
    $region12: #{tpu_custom_call.1} parent=1 // pred_region
      %s28 = ssub.s32 256, 256
      %29 = vsyncadd [#allocation4], %s28
      %s31 = sshll.u32 [#allocation5], 4
      %s32 = int_to_ptr.vmem [resolvable:$true] %s31
      %34 = dma.vmem_to_hbm [thread:$0]  %s32, 256, %s1, [#allocation4]
    $region13: #{tpu_custom_call.1} parent=1 // pred_fallthru
      _
    // Predicated region
    $region14: #{tpu_custom_call.1} parent=1 // pred_check
      _
    $region15: #{tpu_custom_call.1} parent=1 // pred_check_branch
      %36 = sbr.rel (0) target = $region17
    $region16: #{tpu_custom_call.1} parent=1 // pred_region
      %37 = dma.done [#allocation4], 256
    $region17: #{tpu_custom_call.1} parent=1 // pred_fallthru
      _
    %38 = vsyncpa [#allocation3], 1
    %39 = vsyncpa [#allocation4], 1

</llo_original>
